<compile_context>
chip_gen: v7x
topology: tpu7x:2x2x1
jax: 0.10.0
libtpu: 0.0.40
codegen_flags: <defaults>
</compile_context>

<pallas_src>
import functools

import numpy as np
import jax
import jax.numpy as jnp
from jax.experimental import pallas as pl
from jax.experimental.pallas import tpu as pltpu


_HIDDEN = 128
_LANE = 128


def _round_up(x, m):
    return ((x + m - 1) // m) * m


def _round_down(x, m):
    return (x // m) * m


def _tpu_topology():
    """Returns (is_v7x, physical_vmem_bytes) with conservative fallbacks."""
    kind = ""
    try:
        kind = (jax.devices()[0].device_kind or "").lower()
    except Exception:
        pass
    is_v7 = ("v7" in kind) or ("7x" in kind)
    try:
        vmem = int(pltpu.get_tpu_info().vmem_capacity_bytes)
    except Exception:
        vmem = 64 * 1024 * 1024  # assume smallest per-TC VMEM (v7x) if unknown
    return is_v7, vmem


def _mlp_kernel(layer_num, has_out, compute_dtype, *refs):
    """refs = (x, w0, b0, [wh, bh], [wo, bo], out). All blocks live in VMEM."""
    idx = 0
    x_ref = refs[idx]; idx += 1
    w0_ref, b0_ref = refs[idx], refs[idx + 1]; idx += 2
    wh_ref = bh_ref = None
    if layer_num > 0:
        wh_ref, bh_ref = refs[idx], refs[idx + 1]; idx += 2
    wo_ref = bo_ref = None
    if has_out:
        wo_ref, bo_ref = refs[idx], refs[idx + 1]; idx += 2
    out_ref = refs[idx]

    # Layer 0: x is already streamed in compute_dtype (no in-kernel cast).
    # MXU accumulates in f32; bias add / ReLU stay f32 (no bf16 VPU on v5e).
    h = jnp.dot(x_ref[...], w0_ref[...], preferred_element_type=jnp.float32)
    h = jnp.maximum(h + b0_ref[...].astype(jnp.float32), 0.0)

    # Hidden layers (statically unrolled; weights stacked as (L, 128, 128)).
    for i in range(layer_num):
        h = jnp.dot(h.astype(compute_dtype), wh_ref[i],
                    preferred_element_type=jnp.float32)
        h = jnp.maximum(h + bh_ref[i].astype(jnp.float32), 0.0)

    # Output layer (zero-padded to a lane-dense 128-multiple), no ReLU.
    if has_out:
        h = jnp.dot(h.astype(compute_dtype), wo_ref[...],
                    preferred_element_type=jnp.float32)
        h = h + bo_ref[...].astype(jnp.float32)

    out_ref[...] = h.astype(out_ref.dtype)


@functools.partial(
    jax.jit,
    static_argnames=("layer_num", "has_out", "out_dim", "bf16_out",
                     "is_v7", "vmem_bytes", "max_tb"))
def _mlp_forward(x_flat, params, *, layer_num, has_out, out_dim,
                 bf16_out, is_v7, vmem_bytes, max_tb):
    """x_flat: (batch, in_dim) f32. params: packed tuple (see NetPallas)."""
    batch, in_dim = x_flat.shape
    hidden = _HIDDEN
    compute_dtype = params[0].dtype
    x_item = jnp.dtype(compute_dtype).itemsize
    out_dtype = jnp.bfloat16 if bf16_out else jnp.float32
    out_item = jnp.dtype(out_dtype).itemsize

    in_pad = params[0].shape[0]                          # 128-aligned at init
    out_pad = params[-2].shape[1] if has_out else hidden  # lane-dense output

    # ---- batch tile from an explicit per-generation VMEM budget ----
    sub = 16 if x_item == 2 else 8                       # bf16 packs 2 rows/sublane
    weight_bytes = 2 * sum(int(p.size) * p.dtype.itemsize for p in params)
    per_row = (2 * in_pad * x_item        # double-buffered x tile
               + 2 * out_pad * out_item   # double-buffered output tile
               + 4 * hidden * 4)          # f32 intermediates / headroom
    budget = int(0.4 * vmem_bytes)        # <= ~half of physical VMEM
    avail = max(budget - weight_bytes, per_row * sub)
    tb_cap = max(sub, _round_down(avail // per_row, sub))
    if max_tb is None:
        max_tb = 2048 if vmem_bytes >= (100 << 20) else 1024  # v5e/v6e vs v7x
    tb_big = min(max_tb, tb_cap)
    if batch <= tb_big:
        tb = _round_up(batch, sub)        # single grid step, minimal padding
    else:
        # Multi-step: multiples of 256 feed the 256-wide MXU in full passes.
        tb = _round_down(tb_big, 256) if tb_big >= 256 else _round_down(tb_big, sub)
        tb = max(tb, sub)

    bp = _round_up(batch, tb)
    grid = (bp // tb,)

    # Pad rows to the tile and lanes to in_pad, stream in compute_dtype.
    xp = jnp.pad(x_flat, ((0, bp - batch), (0, in_pad - in_dim))).astype(compute_dtype)

    x_spec = pl.BlockSpec((tb, in_pad), lambda i: (i, 0))
    out_spec = pl.BlockSpec((tb, out_pad), lambda i: (i, 0))
    # Weights/biases: full-array blocks, constant index_map -> fetched once,
    # VMEM-resident across grid steps.  Budget above counts them
    # double-buffered; pl.Buffered(1) on these specs would halve that on v7x.
    param_specs = [
        pl.BlockSpec(p.shape, lambda i, n=p.ndim: (0,) * n) for p in params
    ]

    kernel = functools.partial(_mlp_kernel, layer_num, has_out, compute_dtype)

    # Scoped-VMEM limit: comfortably above the actual footprint, under physical.
    est = weight_bytes + tb * per_row + (1 << 20)
    vmem_limit = int(min(int(0.85 * vmem_bytes), max(32 << 20, 2 * est)))
    vmem_limit = int(max(vmem_limit, est))

    # v7x: shard the batch grid across both TensorCores.
    batch_sem = (pltpu.CORE_PARALLEL
                 if (is_v7 and hasattr(pltpu, "CORE_PARALLEL")) else "parallel")

    flops = 2 * bp * (in_pad * hidden
                      + layer_num * hidden * hidden
                      + (hidden * out_pad if has_out else 0))
    bytes_accessed = (bp * in_pad * x_item
                      + sum(int(p.size) * p.dtype.itemsize for p in params)
                      + bp * out_pad * out_item)

    out = pl.pallas_call(
        kernel,
        out_shape=jax.ShapeDtypeStruct((bp, out_pad), out_dtype),
        grid=grid,
        in_specs=[x_spec] + param_specs,
        out_specs=out_spec,
        compiler_params=pltpu.CompilerParams(
            dimension_semantics=(batch_sem,),
            vmem_limit_bytes=vmem_limit),
        cost_estimate=pl.CostEstimate(
            flops=int(flops), transcendentals=0,
            bytes_accessed=int(bytes_accessed)),
    )(xp, *params)

    return out[:batch, :out_dim]


class NetPallas:
    """JAX/Pallas port of:
        model = [Linear(prod(state_shape), 128), ReLU]
                + layer_num * [Linear(128, 128), ReLU]
                + ([Linear(128, prod(action_shape))] if action_shape else [])
    """

    HIDDEN = _HIDDEN

    def __init__(self, layer_num, state_shape, action_shape=0, key=None,
                 compute_dtype=jnp.float32, bf16_out=False, max_tb=None):
        if key is None:
            key = jax.random.PRNGKey(0)
        in_dim = int(np.prod(state_shape))
        self.in_dim = in_dim
        self.layer_num = int(layer_num)
        self.has_out = bool(action_shape)
        self.out_dim = int(np.prod(action_shape)) if action_shape else self.HIDDEN
        self.bf16_out = bool(bf16_out)
        self.max_tb = max_tb
        self._is_v7, self._vmem_bytes = _tpu_topology()

        dims = [in_dim] + [self.HIDDEN] * (1 + self.layer_num)
        if self.has_out:
            dims.append(self.out_dim)

        # Deterministic init mimicking torch.nn.Linear default:
        # uniform(-1/sqrt(fan_in), 1/sqrt(fan_in)).
        self.params = []   # unpadded f32 (W (in,out), b (out,)) for reference math
        for i in range(len(dims) - 1):
            fan_in, fan_out = dims[i], dims[i + 1]
            key, kw, kb = jax.random.split(key, 3)
            bound = 1.0 / np.sqrt(fan_in)
            w = jax.random.uniform(kw, (fan_in, fan_out), jnp.float32,
                                   minval=-bound, maxval=bound)
            b = jax.random.uniform(kb, (fan_out,), jnp.float32,
                                   minval=-bound, maxval=bound)
            self.params.append((w, b))

        # One-time kernel parameter prep: dtype cast, bias reshape, hidden
        # layer stacking, lane-dense zero padding of BOTH in_dim (w0 rows)
        # and out_dim (last-layer cols).
        cd = compute_dtype
        in_pad = _round_up(in_dim, _LANE)
        w0, b0 = self.params[0]
        w0 = jnp.pad(w0, ((0, in_pad - in_dim), (0, 0)))   # zero rows match zero x lanes
        packed = [w0.astype(cd), b0.reshape(1, -1).astype(jnp.float32)]
        if self.layer_num > 0:
            wh = jnp.stack([self.params[1 + i][0]
                            for i in range(self.layer_num)]).astype(cd)
            bh = jnp.stack([self.params[1 + i][1].reshape(1, -1)
                            for i in range(self.layer_num)]).astype(jnp.float32)
            packed += [wh, bh]
        if self.has_out:
            wo, bo = self.params[-1]
            out_pad = _round_up(self.out_dim, _LANE)
            pad_cols = out_pad - self.out_dim
            wo = jnp.pad(wo, ((0, 0), (0, pad_cols)))      # zero cols: logits unchanged
            bo = jnp.pad(bo, ((0, pad_cols),))
            packed += [wo.astype(cd), bo.reshape(1, -1).astype(jnp.float32)]
        self._packed = tuple(jax.device_put(p) for p in packed)

    def __call__(self, s, state=None, info={}):
        s = jnp.asarray(s, dtype=jnp.float32)
        batch = s.shape[0]
        s = s.reshape(batch, -1)                 # == s.view(batch, -1)
        logits = _mlp_forward(s, self._packed,
                              layer_num=self.layer_num,
                              has_out=self.has_out,
                              out_dim=self.out_dim,
                              bf16_out=self.bf16_out,
                              is_v7=self._is_v7,
                              vmem_bytes=self._vmem_bytes,
                              max_tb=self.max_tb)
        return logits, state


if __name__ == "__main__":
    # batch=2, state_shape=(4, 16, 16) -> 1024 flattened features,
    # layer_num=2 hidden blocks, action_shape=4 logits.
    key = jax.random.PRNGKey(0)
    k_x, k_net = jax.random.split(key)

    batch = 2
    state_shape = (4, 16, 16)
    layer_num = 2
    action_shape = 4

    x = jax.random.normal(k_x, (batch,) + state_shape, dtype=jnp.float32)

    # --- f32 path (exact semantics of the PyTorch module) ---
    net = NetPallas(layer_num, state_shape, action_shape, key=k_net)
    logits, st = net(x)
    logits = jax.block_until_ready(logits)

    assert logits.shape == (batch, action_shape), logits.shape
    assert st is None
    assert bool(jnp.all(jnp.isfinite(logits)))

    # Plain-JAX reference of the same math (unpadded params).
    h = x.reshape(batch, -1)
    for li, (w, b) in enumerate(net.params):
        h = h @ w + b
        if li < len(net.params) - 1 or not net.has_out:
            h = jnp.maximum(h, 0.0)
    assert bool(jnp.allclose(h, logits, atol=1e-4, rtol=1e-4))

    # --- bf16 path: bf16 weights + bf16-streamed x + bf16 output, f32 accum ---
    net_bf16 = NetPallas(layer_num, state_shape, action_shape, key=k_net,
                         compute_dtype=jnp.bfloat16, bf16_out=True)
    logits_bf16, _ = net_bf16(x)
    logits_bf16 = jax.block_until_ready(logits_bf16)
    assert logits_bf16.shape == (batch, action_shape)
    assert logits_bf16.dtype == jnp.bfloat16
    assert bool(jnp.allclose(h, logits_bf16.astype(jnp.float32),
                             atol=5e-2, rtol=5e-2))

    print("KERNEL_OK")
</pallas_src>

<mosaic_0001>
module attributes {stable_mosaic.version = 11 : i64} {
  func.func @_mlp_kernel(%arg0: i32, %arg1: memref<8x1024xf32, #tpu.memory_space<vmem>>, %arg2: memref<1024x128xf32, #tpu.memory_space<vmem>>, %arg3: memref<1x128xf32, #tpu.memory_space<vmem>>, %arg4: memref<2x128x128xf32, #tpu.memory_space<vmem>>, %arg5: memref<2x1x128xf32, #tpu.memory_space<vmem>>, %arg6: memref<128x128xf32, #tpu.memory_space<vmem>>, %arg7: memref<1x128xf32, #tpu.memory_space<vmem>>, %arg8: memref<8x128xf32, #tpu.memory_space<vmem>>) attributes {dimension_semantics = [#tpu.dimension_semantics<parallel>], iteration_bounds = array<i64: 1>, scalar_prefetch = 0 : i64, scratch_operands = 0 : i64, tpu.core_type = #tpu.core_type<tc>, window_params = [{transform_indices = @transform_0, window_bounds = array<i64: 8, 1024>}, {pipeline_mode = #tpu.pipeline_mode<synchronous>, transform_indices = @transform_1, window_bounds = array<i64: 1024, 128>}, {pipeline_mode = #tpu.pipeline_mode<synchronous>, transform_indices = @transform_2, window_bounds = array<i64: 1, 128>}, {pipeline_mode = #tpu.pipeline_mode<synchronous>, transform_indices = @transform_3, window_bounds = array<i64: 2, 128, 128>}, {pipeline_mode = #tpu.pipeline_mode<synchronous>, transform_indices = @transform_4, window_bounds = array<i64: 2, 1, 128>}, {pipeline_mode = #tpu.pipeline_mode<synchronous>, transform_indices = @transform_5, window_bounds = array<i64: 128, 128>}, {pipeline_mode = #tpu.pipeline_mode<synchronous>, transform_indices = @transform_6, window_bounds = array<i64: 1, 128>}, {transform_indices = @transform_7, window_bounds = array<i64: 8, 128>}]} {
    %c0 = arith.constant 0 : index
    %c0_0 = arith.constant 0 : index
    %0 = vector.load %arg1[%c0, %c0_0] : memref<8x1024xf32, #tpu.memory_space<vmem>>, vector<8x1024xf32>
    %c0_1 = arith.constant 0 : index
    %c0_2 = arith.constant 0 : index
    %1 = vector.load %arg2[%c0_1, %c0_2] : memref<1024x128xf32, #tpu.memory_space<vmem>>, vector<1024x128xf32>
    %cst = arith.constant dense<0.000000e+00> : vector<8x128xf32>
    %2 = tpu.matmul %0, %1, %cst {dimension_numbers = #tpu.dot_dimension_numbers<[1], [0], [0], [1], [0, 0, 1, 1], [], []>} : vector<8x1024xf32>, vector<1024x128xf32>, vector<8x128xf32> -> vector<8x128xf32>
    %c0_3 = arith.constant 0 : index
    %c0_4 = arith.constant 0 : index
    %3 = vector.load %arg3[%c0_3, %c0_4] : memref<1x128xf32, #tpu.memory_space<vmem>>, vector<1x128xf32>
    %4 = vector.broadcast %3 : vector<1x128xf32> to vector<8x128xf32>
    %5 = arith.addf %2, %4 : vector<8x128xf32>
    %cst_5 = arith.constant 0.000000e+00 : f32
    %6 = vector.broadcast %cst_5 : f32 to vector<8x128xf32>
    %7 = arith.maximumf %5, %6 : vector<8x128xf32>
    %c0_6 = arith.constant 0 : index
    %c0_7 = arith.constant 0 : index
    %c0_8 = arith.constant 0 : index
    %8 = vector.load %arg4[%c0_6, %c0_7, %c0_8] : memref<2x128x128xf32, #tpu.memory_space<vmem>>, vector<1x128x128xf32>
    %9 = vector.shape_cast %8 : vector<1x128x128xf32> to vector<128x128xf32>
    %cst_9 = arith.constant dense<0.000000e+00> : vector<8x128xf32>
    %10 = tpu.matmul %7, %9, %cst_9 {dimension_numbers = #tpu.dot_dimension_numbers<[1], [0], [0], [1], [0, 0, 1, 1], [], []>} : vector<8x128xf32>, vector<128x128xf32>, vector<8x128xf32> -> vector<8x128xf32>
    %c0_10 = arith.constant 0 : index
    %c0_11 = arith.constant 0 : index
    %c0_12 = arith.constant 0 : index
    %11 = vector.load %arg5[%c0_10, %c0_11, %c0_12] : memref<2x1x128xf32, #tpu.memory_space<vmem>>, vector<1x1x128xf32>
    %12 = vector.shape_cast %11 : vector<1x1x128xf32> to vector<1x128xf32>
    %13 = vector.broadcast %12 : vector<1x128xf32> to vector<8x128xf32>
    %14 = arith.addf %10, %13 : vector<8x128xf32>
    %cst_13 = arith.constant 0.000000e+00 : f32
    %15 = vector.broadcast %cst_13 : f32 to vector<8x128xf32>
    %16 = arith.maximumf %14, %15 : vector<8x128xf32>
    %c1 = arith.constant 1 : index
    %c0_14 = arith.constant 0 : index
    %c0_15 = arith.constant 0 : index
    %17 = vector.load %arg4[%c1, %c0_14, %c0_15] : memref<2x128x128xf32, #tpu.memory_space<vmem>>, vector<1x128x128xf32>
    %18 = vector.shape_cast %17 : vector<1x128x128xf32> to vector<128x128xf32>
    %cst_16 = arith.constant dense<0.000000e+00> : vector<8x128xf32>
    %19 = tpu.matmul %16, %18, %cst_16 {dimension_numbers = #tpu.dot_dimension_numbers<[1], [0], [0], [1], [0, 0, 1, 1], [], []>} : vector<8x128xf32>, vector<128x128xf32>, vector<8x128xf32> -> vector<8x128xf32>
    %c1_17 = arith.constant 1 : index
    %c0_18 = arith.constant 0 : index
    %c0_19 = arith.constant 0 : index
    %20 = vector.load %arg5[%c1_17, %c0_18, %c0_19] : memref<2x1x128xf32, #tpu.memory_space<vmem>>, vector<1x1x128xf32>
    %21 = vector.shape_cast %20 : vector<1x1x128xf32> to vector<1x128xf32>
    %22 = vector.broadcast %21 : vector<1x128xf32> to vector<8x128xf32>
    %23 = arith.addf %19, %22 : vector<8x128xf32>
    %cst_20 = arith.constant 0.000000e+00 : f32
    %24 = vector.broadcast %cst_20 : f32 to vector<8x128xf32>
    %25 = arith.maximumf %23, %24 : vector<8x128xf32>
    %c0_21 = arith.constant 0 : index
    %c0_22 = arith.constant 0 : index
    %26 = vector.load %arg6[%c0_21, %c0_22] : memref<128x128xf32, #tpu.memory_space<vmem>>, vector<128x128xf32>
    %cst_23 = arith.constant dense<0.000000e+00> : vector<8x128xf32>
    %27 = tpu.matmul %25, %26, %cst_23 {dimension_numbers = #tpu.dot_dimension_numbers<[1], [0], [0], [1], [0, 0, 1, 1], [], []>} : vector<8x128xf32>, vector<128x128xf32>, vector<8x128xf32> -> vector<8x128xf32>
    %c0_24 = arith.constant 0 : index
    %c0_25 = arith.constant 0 : index
    %28 = vector.load %arg7[%c0_24, %c0_25] : memref<1x128xf32, #tpu.memory_space<vmem>>, vector<1x128xf32>
    %29 = vector.broadcast %28 : vector<1x128xf32> to vector<8x128xf32>
    %30 = arith.addf %27, %29 : vector<8x128xf32>
    %c0_26 = arith.constant 0 : index
    %c0_27 = arith.constant 0 : index
    %31 = vector.load %arg8[%c0_26, %c0_27] : memref<8x128xf32, #tpu.memory_space<vmem>>, vector<8x128xf32>
    tpu.vector_store %arg8[%c0_26, %c0_27], %30 {strides = array<i32>} : memref<8x128xf32, #tpu.memory_space<vmem>>, vector<8x128xf32>,
    return
  }
  func.func @transform_0(%arg0: i32) -> (i32, i32) {
    %c0_i32 = arith.constant 0 : i32
    %c0_i32_0 = arith.constant 0 : i32
    return %arg0, %c0_i32 : i32, i32
  }
  func.func @transform_1(%arg0: i32) -> (i32, i32) {
    %c0_i32 = arith.constant 0 : i32
    %c0_i32_0 = arith.constant 0 : i32
    %c0_i32_1 = arith.constant 0 : i32
    return %c0_i32, %c0_i32_0 : i32, i32
  }
  func.func @transform_2(%arg0: i32) -> (i32, i32) {
    %c0_i32 = arith.constant 0 : i32
    %c0_i32_0 = arith.constant 0 : i32
    %c0_i32_1 = arith.constant 0 : i32
    return %c0_i32, %c0_i32_0 : i32, i32
  }
  func.func @transform_3(%arg0: i32) -> (i32, i32, i32) {
    %c0_i32 = arith.constant 0 : i32
    %c0_i32_0 = arith.constant 0 : i32
    %c0_i32_1 = arith.constant 0 : i32
    %c0_i32_2 = arith.constant 0 : i32
    return %c0_i32, %c0_i32_0, %c0_i32_1 : i32, i32, i32
  }
  func.func @transform_4(%arg0: i32) -> (i32, i32, i32) {
    %c0_i32 = arith.constant 0 : i32
    %c0_i32_0 = arith.constant 0 : i32
    %c0_i32_1 = arith.constant 0 : i32
    %c0_i32_2 = arith.constant 0 : i32
    return %c0_i32, %c0_i32_0, %c0_i32_1 : i32, i32, i32
  }
  func.func @transform_5(%arg0: i32) -> (i32, i32) {
    %c0_i32 = arith.constant 0 : i32
    %c0_i32_0 = arith.constant 0 : i32
    %c0_i32_1 = arith.constant 0 : i32
    return %c0_i32, %c0_i32_0 : i32, i32
  }
  func.func @transform_6(%arg0: i32) -> (i32, i32) {
    %c0_i32 = arith.constant 0 : i32
    %c0_i32_0 = arith.constant 0 : i32
    %c0_i32_1 = arith.constant 0 : i32
    return %c0_i32, %c0_i32_0 : i32, i32
  }
  func.func @transform_7(%arg0: i32) -> (i32, i32) {
    %c0_i32 = arith.constant 0 : i32
    %c0_i32_0 = arith.constant 0 : i32
    return %arg0, %c0_i32 : i32, i32
  }
}

</mosaic_0001>

<llo_original>
// kernel: _mlp_forward.1
$region0: #{_mlp_forward.1}
  #allocation0 [shape = 'u32[]', space=smem, size = 0x4, offset = 0x4, fixed_abs, tag = 'smem constant byte address 0x4 - core index']
  #allocation1 [shape = 'u32[144,128]{1,0:T(1,128)}', space=vmem, size = 0x12000, scoped, tag = 'internal scratch']
  %s0 = inlined_call_operand.vmem [shape: f32[8,1024], index: 0, kind: input, shape index: {}]
  %s1 = inlined_call_operand.hbm [shape: f32[1024,128], index: 1, kind: input, shape index: {}]
  %s2 = inlined_call_operand.vmem [shape: f32[1,128], index: 2, kind: input, shape index: {}]
  %s3 = inlined_call_operand.hbm [shape: f32[2,128,128], index: 3, kind: input, shape index: {}]
  %s4 = inlined_call_operand.vmem [shape: f32[2,1,128], index: 4, kind: input, shape index: {}]
  %s5 = inlined_call_operand.hbm [shape: f32[128,128], index: 5, kind: input, shape index: {}]
  %s6 = inlined_call_operand.vmem [shape: f32[1,128], index: 6, kind: input, shape index: {}]
  %s7 = inlined_call_operand.vmem [shape: f32[8,128], index: 7, kind: output, shape index: {}]
  %s8 = sld [smem:[#allocation0]]
  $region50: #{_mlp_forward.1} parent=0
    _
  %s10 = ssub.s32 1, %s8
  %s11 = scalar_select 0, %s10, %s8
  $region1: #{_mlp_forward.1} parent=0
    #allocation2 [shape = 'u8[524288]{0}', space=vmem, size = 0x80000, scoped, tag = 'input window, operand 1, single buffered']
    #allocation3 [shape = 's32[1]{0}', space=sflag, size = 0x4, scoped, tag = 'scoped memory for _mlp_forward.1']
    #allocation4 [shape = 'u8[131072]{0}', space=vmem, size = 0x20000, scoped, tag = 'input window, operand 3, single buffered']
    #allocation5 [shape = 's32[1]{0}', space=sflag, size = 0x4, scoped, tag = 'scoped memory for _mlp_forward.1']
    #allocation6 [shape = 'u8[65536]{0}', space=vmem, size = 0x10000, scoped, tag = 'input window, operand 5, single buffered']
    %12 = vsyncpa [#allocation3], 0
    %13 = vsyncpa [#allocation5], 0
    // Predicated region
    $region2: #{_mlp_forward.1} parent=1 // pred_check
      _
    $region3: #{_mlp_forward.1} parent=1 // pred_check_branch
      %15 = sbr.rel (0) target = $region5
    $region4: #{_mlp_forward.1} parent=1 // pred_region
      _
    $region5: #{_mlp_forward.1} parent=1 // pred_fallthru
      _
    // Predicated region
    $region6: #{_mlp_forward.1} parent=1 // pred_check
      _
    $region7: #{_mlp_forward.1} parent=1 // pred_check_branch
      %17 = sbr.rel (0) target = $region9
    $region8: #{_mlp_forward.1} parent=1 // pred_region
      %s19 = ssub.s32 16384, 16384
      %20 = vsyncadd [#allocation3], %s19
      %s21 = sshll.u32 [#allocation2], 4
      %s22 = int_to_ptr.vmem [resolvable:$true] %s21
      %27 = dma.hbm_to_vmem [thread:$0]  %s1, 16384, %s22, [#allocation3], 128, 128, 8
    $region9: #{_mlp_forward.1} parent=1 // pred_fallthru
      _
    // Predicated region
    $region10: #{_mlp_forward.1} parent=1 // pred_check
      _
    $region11: #{_mlp_forward.1} parent=1 // pred_check_branch
      %29 = sbr.rel (0) target = $region13
    $region12: #{_mlp_forward.1} parent=1 // pred_region
      _
    $region13: #{_mlp_forward.1} parent=1 // pred_fallthru
      _
    // Predicated region
    $region14: #{_mlp_forward.1} parent=1 // pred_check
      _
    $region15: #{_mlp_forward.1} parent=1 // pred_check_branch
      %31 = sbr.rel (0) target = $region17
    $region16: #{_mlp_forward.1} parent=1 // pred_region
      %s33 = ssub.s32 4096, 4096
      %34 = vsyncadd [#allocation5], %s33
      %s35 = sshll.u32 [#allocation4], 4
      %s36 = int_to_ptr.vmem [resolvable:$true] %s35
      %41 = dma.hbm_to_vmem [thread:$0]  %s3, 4096, %s36, [#allocation5], 128, 128, 8
    $region17: #{_mlp_forward.1} parent=1 // pred_fallthru
      _
    // Predicated region
    $region18: #{_mlp_forward.1} parent=1 // pred_check
      _
    $region19: #{_mlp_forward.1} parent=1 // pred_check_branch
      %43 = sbr.rel (0) target = $region21
    $region20: #{_mlp_forward.1} parent=1 // pred_region
      _
    $region21: #{_mlp_forward.1} parent=1 // pred_fallthru
      _
    // Predicated region
    $region22: #{_mlp_forward.1} parent=1 // pred_check
      _
    $region23: #{_mlp_forward.1} parent=1 // pred_check_branch
      %45 = sbr.rel (0) target = $region25
    $region24: #{_mlp_forward.1} parent=1 // pred_region
      %s47 = ssub.s32 2048, 2048
      %48 = vsyncadd [#allocation5], %s47
      %s49 = sshll.u32 [#allocation6], 4
      %s50 = int_to_ptr.vmem [resolvable:$true] %s49
      %55 = dma.hbm_to_vmem [thread:$0]  %s5, 2048, %s50, [#allocation5], 128, 128, 8
    $region25: #{_mlp_forward.1} parent=1 // pred_fallthru
      _
    // Predicated region
    $region26: #{_mlp_forward.1} parent=1 // pred_check
      _
    $region27: #{_mlp_forward.1} parent=1 // pred_check_branch
      %57 = sbr.rel (0) target = $region29
    $region28: #{_mlp_forward.1} parent=1 // pred_region
      _
    $region29: #{_mlp_forward.1} parent=1 // pred_fallthru
      _
    // Predicated region
    $region30: #{_mlp_forward.1} parent=1 // pred_check
      _
    $region31: #{_mlp_forward.1} parent=1 // pred_check_branch
      %59 = sbr.rel (0) target = $region33
    $region32: #{_mlp_forward.1} parent=1 // pred_region
      %60 = dma.done [#allocation3], 16384
    $region33: #{_mlp_forward.1} parent=1 // pred_fallthru
      _
    // Predicated region
    $region34: #{_mlp_forward.1} parent=1 // pred_check
      _
    $region35: #{_mlp_forward.1} parent=1 // pred_check_branch
      %62 = sbr.rel (0) target = $region37
    $region36: #{_mlp_forward.1} parent=1 // pred_region
      %63 = dma.done [#allocation5], 4096
    $region37: #{_mlp_forward.1} parent=1 // pred_fallthru
      _
    // Predicated region
    $region38: #{_mlp_forward.1} parent=1 // pred_check
      _
    $region39: #{_mlp_forward.1} parent=1 // pred_check_branch
      %65 = sbr.rel (0) target = $region41
    $region40: #{_mlp_forward.1} parent=1 // pred_region
      %66 = dma.done [#allocation5], 2048
    $region41: #{_mlp_forward.1} parent=1 // pred_fallthru
      _
    %v67 = vld [vmem:[%s0] sm:$0xff]
    %v68 = vld [vmem:[%s0 + $0x8] sm:$0xff]
    %v69 = vld [vmem:[%s0 + $0x10] sm:$0xff]
    %v70 = vld [vmem:[%s0 + $0x18] sm:$0xff]
    %v71 = vld [vmem:[%s0 + $0x20] sm:$0xff]
    %v72 = vld [vmem:[%s0 + $0x28] sm:$0xff]
    %v73 = vld [vmem:[%s0 + $0x30] sm:$0xff]
    %v74 = vld [vmem:[%s0 + $0x38] sm:$0xff]
    %v75 = vld [vmem:[#allocation2] sm:$0xff]
    %v76 = vld [vmem:[#allocation2 + $0x8] sm:$0xff]
    %v77 = vld [vmem:[#allocation2 + $0x10] sm:$0xff]
    %v78 = vld [vmem:[#allocation2 + $0x18] sm:$0xff]
    %v79 = vld [vmem:[#allocation2 + $0x20] sm:$0xff]
    %v80 = vld [vmem:[#allocation2 + $0x28] sm:$0xff]
    %v81 = vld [vmem:[#allocation2 + $0x30] sm:$0xff]
    %v82 = vld [vmem:[#allocation2 + $0x38] sm:$0xff]
    %v83 = vld [vmem:[#allocation2 + $0x40] sm:$0xff]
    %v84 = vld [vmem:[#allocation2 + $0x48] sm:$0xff]
    %v85 = vld [vmem:[#allocation2 + $0x50] sm:$0xff]
    %v86 = vld [vmem:[#allocation2 + $0x58] sm:$0xff]
    %v87 = vld [vmem:[#allocation2 + $0x60] sm:$0xff]
    %v88 = vld [vmem:[#allocation2 + $0x68] sm:$0xff]
    %v89 = vld [vmem:[#allocation2 + $0x70] sm:$0xff]
    %v90 = vld [vmem:[#allocation2 + $0x78] sm:$0xff]
    %v91 = vld [vmem:[#allocation2 + $0x80] sm:$0xff]
    %v92 = vld [vmem:[#allocation2 + $0x88] sm:$0xff]
    %v93 = vld [vmem:[#allocation2 + $0x90] sm:$0xff]
    %v94 = vld [vmem:[#allocation2 + $0x98] sm:$0xff]
    %v95 = vld [vmem:[#allocation2 + $0xa0] sm:$0xff]
    %v96 = vld [vmem:[#allocation2 + $0xa8] sm:$0xff]
    %v97 = vld [vmem:[#allocation2 + $0xb0] sm:$0xff]
    %v98 = vld [vmem:[#allocation2 + $0xb8] sm:$0xff]
    %v99 = vld [vmem:[#allocation2 + $0xc0] sm:$0xff]
    %v100 = vld [vmem:[#allocation2 + $0xc8] sm:$0xff]
    %v101 = vld [vmem:[#allocation2 + $0xd0] sm:$0xff]
    %v102 = vld [vmem:[#allocation2 + $0xd8] sm:$0xff]
    %v103 = vld [vmem:[#allocation2 + $0xe0] sm:$0xff]
    %v104 = vld [vmem:[#allocation2 + $0xe8] sm:$0xff]
    %v105 = vld [vmem:[#allocation2 + $0xf0] sm:$0xff]
    %v106 = vld [vmem:[#allocation2 + $0xf8] sm:$0xff]
    %v107 = vld [vmem:[#allocation2 + $0x100] sm:$0xff]
    %v108 = vld [vmem:[#allocation2 + $0x108] sm:$0xff]
    %v109 = vld [vmem:[#allocation2 + $0x110] sm:$0xff]
    %v110 = vld [vmem:[#allocation2 + $0x118] sm:$0xff]
    %v111 = vld [vmem:[#allocation2 + $0x120] sm:$0xff]
    %v112 = vld [vmem:[#allocation2 + $0x128] sm:$0xff]
    %v113 = vld [vmem:[#allocation2 + $0x130] sm:$0xff]
    %v114 = vld [vmem:[#allocation2 + $0x138] sm:$0xff]
    %v115 = vld [vmem:[#allocation2 + $0x140] sm:$0xff]
    %v116 = vld [vmem:[#allocation2 + $0x148] sm:$0xff]
    %v117 = vld [vmem:[#allocation2 + $0x150] sm:$0xff]
    %v118 = vld [vmem:[#allocation2 + $0x158] sm:$0xff]
    %v119 = vld [vmem:[#allocation2 + $0x160] sm:$0xff]
    %v120 = vld [vmem:[#allocation2 + $0x168] sm:$0xff]
    %v121 = vld [vmem:[#allocation2 + $0x170] sm:$0xff]
    %v122 = vld [vmem:[#allocation2 + $0x178] sm:$0xff]
    %v123 = vld [vmem:[#allocation2 + $0x180] sm:$0xff]
    %v124 = vld [vmem:[#allocation2 + $0x188] sm:$0xff]
    %v125 = vld [vmem:[#allocation2 + $0x190] sm:$0xff]
    %v126 = vld [vmem:[#allocation2 + $0x198] sm:$0xff]
    %v127 = vld [vmem:[#allocation2 + $0x1a0] sm:$0xff]
    %v128 = vld [vmem:[#allocation2 + $0x1a8] sm:$0xff]
    %v129 = vld [vmem:[#allocation2 + $0x1b0] sm:$0xff]
    %v130 = vld [vmem:[#allocation2 + $0x1b8] sm:$0xff]
    %v131 = vld [vmem:[#allocation2 + $0x1c0] sm:$0xff]
    %v132 = vld [vmem:[#allocation2 + $0x1c8] sm:$0xff]
    %v133 = vld [vmem:[#allocation2 + $0x1d0] sm:$0xff]
    %v134 = vld [vmem:[#allocation2 + $0x1d8] sm:$0xff]
    %v135 = vld [vmem:[#allocation2 + $0x1e0] sm:$0xff]
    %v136 = vld [vmem:[#allocation2 + $0x1e8] sm:$0xff]
    %v137 = vld [vmem:[#allocation2 + $0x1f0] sm:$0xff]
    %v138 = vld [vmem:[#allocation2 + $0x1f8] sm:$0xff]
    %v139 = vld [vmem:[#allocation2 + $0x200] sm:$0xff]
    %v140 = vld [vmem:[#allocation2 + $0x208] sm:$0xff]
    %v141 = vld [vmem:[#allocation2 + $0x210] sm:$0xff]
    %v142 = vld [vmem:[#allocation2 + $0x218] sm:$0xff]
    %v143 = vld [vmem:[#allocation2 + $0x220] sm:$0xff]
    %v144 = vld [vmem:[#allocation2 + $0x228] sm:$0xff]
    %v145 = vld [vmem:[#allocation2 + $0x230] sm:$0xff]
    %v146 = vld [vmem:[#allocation2 + $0x238] sm:$0xff]
    %v147 = vld [vmem:[#allocation2 + $0x240] sm:$0xff]
    %v148 = vld [vmem:[#allocation2 + $0x248] sm:$0xff]
    %v149 = vld [vmem:[#allocation2 + $0x250] sm:$0xff]
    %v150 = vld [vmem:[#allocation2 + $0x258] sm:$0xff]
    %v151 = vld [vmem:[#allocation2 + $0x260] sm:$0xff]
    %v152 = vld [vmem:[#allocation2 + $0x268] sm:$0xff]
    %v153 = vld [vmem:[#allocation2 + $0x270] sm:$0xff]
    %v154 = vld [vmem:[#allocation2 + $0x278] sm:$0xff]
    %v155 = vld [vmem:[#allocation2 + $0x280] sm:$0xff]
    %v156 = vld [vmem:[#allocation2 + $0x288] sm:$0xff]
    %v157 = vld [vmem:[#allocation2 + $0x290] sm:$0xff]
    %v158 = vld [vmem:[#allocation2 + $0x298] sm:$0xff]
    %v159 = vld [vmem:[#allocation2 + $0x2a0] sm:$0xff]
    %v160 = vld [vmem:[#allocation2 + $0x2a8] sm:$0xff]
    %v161 = vld [vmem:[#allocation2 + $0x2b0] sm:$0xff]
    %v162 = vld [vmem:[#allocation2 + $0x2b8] sm:$0xff]
    %v163 = vld [vmem:[#allocation2 + $0x2c0] sm:$0xff]
    %v164 = vld [vmem:[#allocation2 + $0x2c8] sm:$0xff]
    %v165 = vld [vmem:[#allocation2 + $0x2d0] sm:$0xff]
    %v166 = vld [vmem:[#allocation2 + $0x2d8] sm:$0xff]
    %v167 = vld [vmem:[#allocation2 + $0x2e0] sm:$0xff]
    %v168 = vld [vmem:[#allocation2 + $0x2e8] sm:$0xff]
    %v169 = vld [vmem:[#allocation2 + $0x2f0] sm:$0xff]
    %v170 = vld [vmem:[#allocation2 + $0x2f8] sm:$0xff]
    %v171 = vld [vmem:[#allocation2 + $0x300] sm:$0xff]
    %v172 = vld [vmem:[#allocation2 + $0x308] sm:$0xff]
    %v173 = vld [vmem:[#allocation2 + $0x310] sm:$0xff]
    %v174 = vld [vmem:[#allocation2 + $0x318] sm:$0xff]
    %v175 = vld [vmem:[#allocation2 + $0x320] sm:$0xff]
    %v176 = vld [vmem:[#allocation2 + $0x328] sm:$0xff]
    %v177 = vld [vmem:[#allocation2 + $0x330] sm:$0xff]
    %v178 = vld [vmem:[#allocation2 + $0x338] sm:$0xff]
    %v179 = vld [vmem:[#allocation2 + $0x340] sm:$0xff]
    %v180 = vld [vmem:[#allocation2 + $0x348] sm:$0xff]
    %v181 = vld [vmem:[#allocation2 + $0x350] sm:$0xff]
    %v182 = vld [vmem:[#allocation2 + $0x358] sm:$0xff]
    %v183 = vld [vmem:[#allocation2 + $0x360] sm:$0xff]
    %v184 = vld [vmem:[#allocation2 + $0x368] sm:$0xff]
    %v185 = vld [vmem:[#allocation2 + $0x370] sm:$0xff]
    %v186 = vld [vmem:[#allocation2 + $0x378] sm:$0xff]
    %v187 = vld [vmem:[#allocation2 + $0x380] sm:$0xff]
    %v188 = vld [vmem:[#allocation2 + $0x388] sm:$0xff]
    %v189 = vld [vmem:[#allocation2 + $0x390] sm:$0xff]
    %v190 = vld [vmem:[#allocation2 + $0x398] sm:$0xff]
    %v191 = vld [vmem:[#allocation2 + $0x3a0] sm:$0xff]
    %v192 = vld [vmem:[#allocation2 + $0x3a8] sm:$0xff]
    %v193 = vld [vmem:[#allocation2 + $0x3b0] sm:$0xff]
    %v194 = vld [vmem:[#allocation2 + $0x3b8] sm:$0xff]
    %v195 = vld [vmem:[#allocation2 + $0x3c0] sm:$0xff]
    %v196 = vld [vmem:[#allocation2 + $0x3c8] sm:$0xff]
    %v197 = vld [vmem:[#allocation2 + $0x3d0] sm:$0xff]
    %v198 = vld [vmem:[#allocation2 + $0x3d8] sm:$0xff]
    %v199 = vld [vmem:[#allocation2 + $0x3e0] sm:$0xff]
    %v200 = vld [vmem:[#allocation2 + $0x3e8] sm:$0xff]
    %v201 = vld [vmem:[#allocation2 + $0x3f0] sm:$0xff]
    %v202 = vld [vmem:[#allocation2 + $0x3f8] sm:$0xff]
    %v203 = vld [vmem:[%s2] sm:$0x1]
    %v205 = vlaneseq
    %v206 = vshrl.u32 %v205, 7
    %v207 = vsub.s32 0, %v206
    %v208 = vrot.slane %v203, %v207
    %210 = vmatprep.subr.mxu0 0.0
    %211 = vmatpush1.msra.mxu0 %v75
    %212 = vmatprep.subr.mxu0 0.0
    %213 = vmatpush1.msra.mxu0 %v76
    %214 = vmatprep.subr.mxu0 0.0
    %215 = vmatpush1.msra.mxu0 %v77
    %216 = vmatprep.subr.mxu0 0.0
    %217 = vmatpush1.msra.mxu0 %v78
    %218 = vmatprep.subr.mxu0 0.0
    %219 = vmatpush1.msra.mxu0 %v79
    %220 = vmatprep.subr.mxu0 0.0
    %221 = vmatpush1.msra.mxu0 %v80
    %222 = vmatprep.subr.mxu0 0.0
    %223 = vmatpush1.msra.mxu0 %v81
    %224 = vmatprep.subr.mxu0 0.0
    %225 = vmatpush1.msra.mxu0 %v82
    %226 = vmatprep.subr.mxu0 0.0
    %227 = vmatpush1.msra.mxu0 %v83
    %228 = vmatprep.subr.mxu0 0.0
    %229 = vmatpush1.msra.mxu0 %v84
    %230 = vmatprep.subr.mxu0 0.0
    %231 = vmatpush1.msra.mxu0 %v85
    %232 = vmatprep.subr.mxu0 0.0
    %233 = vmatpush1.msra.mxu0 %v86
    %234 = vmatprep.subr.mxu0 0.0
    %235 = vmatpush1.msra.mxu0 %v87
    %236 = vmatprep.subr.mxu0 0.0
    %237 = vmatpush1.msra.mxu0 %v88
    %238 = vmatprep.subr.mxu0 0.0
    %239 = vmatpush1.msra.mxu0 %v89
    %240 = vmatprep.subr.mxu0 0.0
    %241 = vmatpush1.msra.mxu0 %v90
    %242 = vmatprep.subr.mxu0 0.0
    %243 = vmatpush1.msra.mxu0 %v91
    %244 = vmatprep.subr.mxu0 0.0
    %245 = vmatpush1.msra.mxu0 %v92
    %246 = vmatprep.subr.mxu0 0.0
    %247 = vmatpush1.msra.mxu0 %v93
    %248 = vmatprep.subr.mxu0 0.0
    %249 = vmatpush1.msra.mxu0 %v94
    %250 = vmatprep.subr.mxu0 0.0
    %251 = vmatpush1.msra.mxu0 %v95
    %252 = vmatprep.subr.mxu0 0.0
    %253 = vmatpush1.msra.mxu0 %v96
    %254 = vmatprep.subr.mxu0 0.0
    %255 = vmatpush1.msra.mxu0 %v97
    %256 = vmatprep.subr.mxu0 0.0
    %257 = vmatpush1.msra.mxu0 %v98
    %258 = vmatprep.subr.mxu0 0.0
    %259 = vmatpush1.msra.mxu0 %v99
    %260 = vmatprep.subr.mxu0 0.0
    %261 = vmatpush1.msra.mxu0 %v100
    %262 = vmatprep.subr.mxu0 0.0
    %263 = vmatpush1.msra.mxu0 %v101
    %264 = vmatprep.subr.mxu0 0.0
    %265 = vmatpush1.msra.mxu0 %v102
    %266 = vmatprep.subr.mxu0 0.0
    %267 = vmatpush1.msra.mxu0 %v103
    %268 = vmatprep.subr.mxu0 0.0
    %269 = vmatpush1.msra.mxu0 %v104
    %270 = vmatprep.subr.mxu0 0.0
    %271 = vmatpush1.msra.mxu0 %v105
    %272 = vmatprep.subr.mxu0 0.0
    %273 = vmatpush1.msra.mxu0 %v106
    %274 = vmatprep.mubr.f32.mxu0 %v68
    %275 = vmatmul.mubr.f32.gmra.mrb[0].mxu0 %v67
    %v276 = vpop.f32.mrb[0].mxu0
    %v277 = vadd.f32 %v208, %v276
    %v278 = vpop.f32.mrb[0].mxu0
    %279 = vdwg.mxu0
    %280 = vmatprep.subr.mxu0 0.0
    %281 = vmatpush1.msra.mxu0 %v107
    %282 = vmatprep.subr.mxu0 0.0
    %283 = vmatpush1.msra.mxu0 %v108
    %284 = vmatprep.subr.mxu0 0.0
    %285 = vmatpush1.msra.mxu0 %v109
    %286 = vmatprep.subr.mxu0 0.0
    %287 = vmatpush1.msra.mxu0 %v110
    %288 = vmatprep.subr.mxu0 0.0
    %289 = vmatpush1.msra.mxu0 %v111
    %290 = vmatprep.subr.mxu0 0.0
    %291 = vmatpush1.msra.mxu0 %v112
    %292 = vmatprep.subr.mxu0 0.0
    %293 = vmatpush1.msra.mxu0 %v113
    %294 = vmatprep.subr.mxu0 0.0
    %295 = vmatpush1.msra.mxu0 %v114
    %296 = vmatprep.subr.mxu0 0.0
    %297 = vmatpush1.msra.mxu0 %v115
    %298 = vmatprep.subr.mxu0 0.0
    %299 = vmatpush1.msra.mxu0 %v116
    %300 = vmatprep.subr.mxu0 0.0
    %301 = vmatpush1.msra.mxu0 %v117
    %302 = vmatprep.subr.mxu0 0.0
    %303 = vmatpush1.msra.mxu0 %v118
    %304 = vmatprep.subr.mxu0 0.0
    %305 = vmatpush1.msra.mxu0 %v119
    %306 = vmatprep.subr.mxu0 0.0
    %307 = vmatpush1.msra.mxu0 %v120
    %308 = vmatprep.subr.mxu0 0.0
    %309 = vmatpush1.msra.mxu0 %v121
    %310 = vmatprep.subr.mxu0 0.0
    %311 = vmatpush1.msra.mxu0 %v122
    %312 = vmatprep.subr.mxu0 0.0
    %313 = vmatpush1.msra.mxu0 %v123
    %314 = vmatprep.subr.mxu0 0.0
    %315 = vmatpush1.msra.mxu0 %v124
    %316 = vmatprep.subr.mxu0 0.0
    %317 = vmatpush1.msra.mxu0 %v125
    %318 = vmatprep.subr.mxu0 0.0
    %319 = vmatpush1.msra.mxu0 %v126
    %320 = vmatprep.subr.mxu0 0.0
    %321 = vmatpush1.msra.mxu0 %v127
    %322 = vmatprep.subr.mxu0 0.0
    %323 = vmatpush1.msra.mxu0 %v128
    %324 = vmatprep.subr.mxu0 0.0
    %325 = vmatpush1.msra.mxu0 %v129
    %326 = vmatprep.subr.mxu0 0.0
    %327 = vmatpush1.msra.mxu0 %v130
    %328 = vmatprep.subr.mxu0 0.0
    %329 = vmatpush1.msra.mxu0 %v131
    %330 = vmatprep.subr.mxu0 0.0
    %331 = vmatpush1.msra.mxu0 %v132
    %332 = vmatprep.subr.mxu0 0.0
    %333 = vmatpush1.msra.mxu0 %v133
    %334 = vmatprep.subr.mxu0 0.0
    %335 = vmatpush1.msra.mxu0 %v134
    %336 = vmatprep.subr.mxu0 0.0
    %337 = vmatpush1.msra.mxu0 %v135
    %338 = vmatprep.subr.mxu0 0.0
    %339 = vmatpush1.msra.mxu0 %v136
    %340 = vmatprep.subr.mxu0 0.0
    %341 = vmatpush1.msra.mxu0 %v137
    %342 = vmatprep.subr.mxu0 0.0
    %343 = vmatpush1.msra.mxu0 %v138
    %344 = vmatprep.mubr.f32.mxu0 %v70
    %345 = vmatmul.mubr.f32.gmra.mrb[0].mxu0 %v69
    %v346 = vpop.f32.mrb[0].mxu0
    %v347 = vadd.f32 %v277, %v346
    %v348 = vpop.f32.mrb[0].mxu0
    %349 = vdwg.mxu0
    %350 = vmatprep.subr.mxu0 0.0
    %351 = vmatpush1.msra.mxu0 %v139
    %352 = vmatprep.subr.mxu0 0.0
    %353 = vmatpush1.msra.mxu0 %v140
    %354 = vmatprep.subr.mxu0 0.0
    %355 = vmatpush1.msra.mxu0 %v141
    %356 = vmatprep.subr.mxu0 0.0
    %357 = vmatpush1.msra.mxu0 %v142
    %358 = vmatprep.subr.mxu0 0.0
    %359 = vmatpush1.msra.mxu0 %v143
    %360 = vmatprep.subr.mxu0 0.0
    %361 = vmatpush1.msra.mxu0 %v144
    %362 = vmatprep.subr.mxu0 0.0
    %363 = vmatpush1.msra.mxu0 %v145
    %364 = vmatprep.subr.mxu0 0.0
    %365 = vmatpush1.msra.mxu0 %v146
    %366 = vmatprep.subr.mxu0 0.0
    %367 = vmatpush1.msra.mxu0 %v147
    %368 = vmatprep.subr.mxu0 0.0
    %369 = vmatpush1.msra.mxu0 %v148
    %370 = vmatprep.subr.mxu0 0.0
    %371 = vmatpush1.msra.mxu0 %v149
    %372 = vmatprep.subr.mxu0 0.0
    %373 = vmatpush1.msra.mxu0 %v150
    %374 = vmatprep.subr.mxu0 0.0
    %375 = vmatpush1.msra.mxu0 %v151
    %376 = vmatprep.subr.mxu0 0.0
    %377 = vmatpush1.msra.mxu0 %v152
    %378 = vmatprep.subr.mxu0 0.0
    %379 = vmatpush1.msra.mxu0 %v153
    %380 = vmatprep.subr.mxu0 0.0
    %381 = vmatpush1.msra.mxu0 %v154
    %382 = vmatprep.subr.mxu0 0.0
    %383 = vmatpush1.msra.mxu0 %v155
    %384 = vmatprep.subr.mxu0 0.0
    %385 = vmatpush1.msra.mxu0 %v156
    %386 = vmatprep.subr.mxu0 0.0
    %387 = vmatpush1.msra.mxu0 %v157
    %388 = vmatprep.subr.mxu0 0.0
    %389 = vmatpush1.msra.mxu0 %v158
    %390 = vmatprep.subr.mxu0 0.0
    %391 = vmatpush1.msra.mxu0 %v159
    %392 = vmatprep.subr.mxu0 0.0
    %393 = vmatpush1.msra.mxu0 %v160
    %394 = vmatprep.subr.mxu0 0.0
    %395 = vmatpush1.msra.mxu0 %v161
    %396 = vmatprep.subr.mxu0 0.0
    %397 = vmatpush1.msra.mxu0 %v162
    %398 = vmatprep.subr.mxu0 0.0
    %399 = vmatpush1.msra.mxu0 %v163
    %400 = vmatprep.subr.mxu0 0.0
    %401 = vmatpush1.msra.mxu0 %v164
    %402 = vmatprep.subr.mxu0 0.0
    %403 = vmatpush1.msra.mxu0 %v165
    %404 = vmatprep.subr.mxu0 0.0
    %405 = vmatpush1.msra.mxu0 %v166
    %406 = vmatprep.subr.mxu0 0.0
    %407 = vmatpush1.msra.mxu0 %v167
    %408 = vmatprep.subr.mxu0 0.0
    %409 = vmatpush1.msra.mxu0 %v168
    %410 = vmatprep.subr.mxu0 0.0
    %411 = vmatpush1.msra.mxu0 %v169
    %412 = vmatprep.subr.mxu0 0.0
    %413 = vmatpush1.msra.mxu0 %v170
    %414 = vmatprep.mubr.f32.mxu0 %v72
    %415 = vmatmul.mubr.f32.gmra.mrb[0].mxu0 %v71
    %v416 = vpop.f32.mrb[0].mxu0
    %v417 = vadd.f32 %v347, %v416
    %v418 = vpop.f32.mrb[0].mxu0
    %419 = vdwg.mxu0
    %420 = vmatprep.subr.mxu0 0.0
    %421 = vmatpush1.msra.mxu0 %v171
    %422 = vmatprep.subr.mxu0 0.0
    %423 = vmatpush1.msra.mxu0 %v172
    %424 = vmatprep.subr.mxu0 0.0
    %425 = vmatpush1.msra.mxu0 %v173
    %426 = vmatprep.subr.mxu0 0.0
    %427 = vmatpush1.msra.mxu0 %v174
    %428 = vmatprep.subr.mxu0 0.0
    %429 = vmatpush1.msra.mxu0 %v175
    %430 = vmatprep.subr.mxu0 0.0
    %431 = vmatpush1.msra.mxu0 %v176
    %432 = vmatprep.subr.mxu0 0.0
    %433 = vmatpush1.msra.mxu0 %v177
    %434 = vmatprep.subr.mxu0 0.0
    %435 = vmatpush1.msra.mxu0 %v178
    %436 = vmatprep.subr.mxu0 0.0
    %437 = vmatpush1.msra.mxu0 %v179
    %438 = vmatprep.subr.mxu0 0.0
    %439 = vmatpush1.msra.mxu0 %v180
    %440 = vmatprep.subr.mxu0 0.0
    %441 = vmatpush1.msra.mxu0 %v181
    %442 = vmatprep.subr.mxu0 0.0
    %443 = vmatpush1.msra.mxu0 %v182
    %444 = vmatprep.subr.mxu0 0.0
    %445 = vmatpush1.msra.mxu0 %v183
    %446 = vmatprep.subr.mxu0 0.0
    %447 = vmatpush1.msra.mxu0 %v184
    %448 = vmatprep.subr.mxu0 0.0
    %449 = vmatpush1.msra.mxu0 %v185
    %450 = vmatprep.subr.mxu0 0.0
    %451 = vmatpush1.msra.mxu0 %v186
    %452 = vmatprep.subr.mxu0 0.0
    %453 = vmatpush1.msra.mxu0 %v187
    %454 = vmatprep.subr.mxu0 0.0
    %455 = vmatpush1.msra.mxu0 %v188
    %456 = vmatprep.subr.mxu0 0.0
    %457 = vmatpush1.msra.mxu0 %v189
    %458 = vmatprep.subr.mxu0 0.0
    %459 = vmatpush1.msra.mxu0 %v190
    %460 = vmatprep.subr.mxu0 0.0
    %461 = vmatpush1.msra.mxu0 %v191
    %462 = vmatprep.subr.mxu0 0.0
    %463 = vmatpush1.msra.mxu0 %v192
    %464 = vmatprep.subr.mxu0 0.0
    %465 = vmatpush1.msra.mxu0 %v193
    %466 = vmatprep.subr.mxu0 0.0
    %467 = vmatpush1.msra.mxu0 %v194
    %468 = vmatprep.subr.mxu0 0.0
    %469 = vmatpush1.msra.mxu0 %v195
    %470 = vmatprep.subr.mxu0 0.0
    %471 = vmatpush1.msra.mxu0 %v196
    %472 = vmatprep.subr.mxu0 0.0
    %473 = vmatpush1.msra.mxu0 %v197
    %474 = vmatprep.subr.mxu0 0.0
    %475 = vmatpush1.msra.mxu0 %v198
    %476 = vmatprep.subr.mxu0 0.0
    %477 = vmatpush1.msra.mxu0 %v199
    %478 = vmatprep.subr.mxu0 0.0
    %479 = vmatpush1.msra.mxu0 %v200
    %480 = vmatprep.subr.mxu0 0.0
    %481 = vmatpush1.msra.mxu0 %v201
    %482 = vmatprep.subr.mxu0 0.0
    %483 = vmatpush1.msra.mxu0 %v202
    %484 = vmatprep.mubr.f32.mxu0 %v74
    %485 = vmatmul.mubr.f32.gmra.mrb[0].mxu0 %v73
    %v486 = vpop.f32.mrb[0].mxu0
    %v487 = vadd.f32 %v417, %v486
    %v488 = vpop.f32.mrb[0].mxu0
    %489 = vdwg.mxu0
    %v490 = vmax.f32 %v487, 0.0
    %v491 = vld [vmem:[#allocation4] sm:$0xff]
    %v492 = vld [vmem:[#allocation4 + $0x8] sm:$0xff]
    %v493 = vld [vmem:[#allocation4 + $0x10] sm:$0xff]
    %v494 = vld [vmem:[#allocation4 + $0x18] sm:$0xff]
    %v495 = vld [vmem:[#allocation4 + $0x20] sm:$0xff]
    %v496 = vld [vmem:[#allocation4 + $0x28] sm:$0xff]
    %v497 = vld [vmem:[#allocation4 + $0x30] sm:$0xff]
    %v498 = vld [vmem:[#allocation4 + $0x38] sm:$0xff]
    %v499 = vld [vmem:[#allocation4 + $0x40] sm:$0xff]
    %v500 = vld [vmem:[#allocation4 + $0x48] sm:$0xff]
    %v501 = vld [vmem:[#allocation4 + $0x50] sm:$0xff]
    %v502 = vld [vmem:[#allocation4 + $0x58] sm:$0xff]
    %v503 = vld [vmem:[#allocation4 + $0x60] sm:$0xff]
    %v504 = vld [vmem:[#allocation4 + $0x68] sm:$0xff]
    %v505 = vld [vmem:[#allocation4 + $0x70] sm:$0xff]
    %v506 = vld [vmem:[#allocation4 + $0x78] sm:$0xff]
    %v507 = vld [vmem:[%s4] sm:$0x1]
    %v509 = vlaneseq
    %v510 = vshrl.u32 %v509, 7
    %v511 = vsub.s32 0, %v510
    %v512 = vrot.slane %v507, %v511
    %514 = vmatprep.subr.mxu0 0.0
    %515 = vmatpush1.msra.mxu0 %v491
    %516 = vmatprep.subr.mxu0 0.0
    %517 = vmatpush1.msra.mxu0 %v492
    %518 = vmatprep.subr.mxu0 0.0
    %519 = vmatpush1.msra.mxu0 %v493
    %520 = vmatprep.subr.mxu0 0.0
    %521 = vmatpush1.msra.mxu0 %v494
    %522 = vmatprep.subr.mxu0 0.0
    %523 = vmatpush1.msra.mxu0 %v495
    %524 = vmatprep.subr.mxu0 0.0
    %525 = vmatpush1.msra.mxu0 %v496
    %526 = vmatprep.subr.mxu0 0.0
    %527 = vmatpush1.msra.mxu0 %v497
    %528 = vmatprep.subr.mxu0 0.0
    %529 = vmatpush1.msra.mxu0 %v498
    %530 = vmatprep.subr.mxu0 0.0
    %531 = vmatpush1.msra.mxu0 %v499
    %532 = vmatprep.subr.mxu0 0.0
    %533 = vmatpush1.msra.mxu0 %v500
    %534 = vmatprep.subr.mxu0 0.0
    %535 = vmatpush1.msra.mxu0 %v501
    %536 = vmatprep.subr.mxu0 0.0
    %537 = vmatpush1.msra.mxu0 %v502
    %538 = vmatprep.subr.mxu0 0.0
    %539 = vmatpush1.msra.mxu0 %v503
    %540 = vmatprep.subr.mxu0 0.0
    %541 = vmatpush1.msra.mxu0 %v504
    %542 = vmatprep.subr.mxu0 0.0
    %543 = vmatpush1.msra.mxu0 %v505
    %544 = vmatprep.subr.mxu0 0.0
    %545 = vmatpush1.msra.mxu0 %v506
    %546 = vmatprep.subr.mxu0 0.0
    %547 = vmatpush1.msra.mxu0 0.0
    %548 = vmatprep.subr.mxu0 0.0
    %549 = vmatpush1.msra.mxu0 0.0
    %550 = vmatprep.subr.mxu0 0.0
    %551 = vmatpush1.msra.mxu0 0.0
    %552 = vmatprep.subr.mxu0 0.0
    %553 = vmatpush1.msra.mxu0 0.0
    %554 = vmatprep.subr.mxu0 0.0
    %555 = vmatpush1.msra.mxu0 0.0
    %556 = vmatprep.subr.mxu0 0.0
    %557 = vmatpush1.msra.mxu0 0.0
    %558 = vmatprep.subr.mxu0 0.0
    %559 = vmatpush1.msra.mxu0 0.0
    %560 = vmatprep.subr.mxu0 0.0
    %561 = vmatpush1.msra.mxu0 0.0
    %562 = vmatprep.subr.mxu0 0.0
    %563 = vmatpush1.msra.mxu0 0.0
    %564 = vmatprep.subr.mxu0 0.0
    %565 = vmatpush1.msra.mxu0 0.0
    %566 = vmatprep.subr.mxu0 0.0
    %567 = vmatpush1.msra.mxu0 0.0
    %568 = vmatprep.subr.mxu0 0.0
    %569 = vmatpush1.msra.mxu0 0.0
    %570 = vmatprep.subr.mxu0 0.0
    %571 = vmatpush1.msra.mxu0 0.0
    %572 = vmatprep.subr.mxu0 0.0
    %573 = vmatpush1.msra.mxu0 0.0
    %574 = vmatprep.subr.mxu0 0.0
    %575 = vmatpush1.msra.mxu0 0.0
    %576 = vmatprep.subr.mxu0 0.0
    %577 = vmatpush1.msra.mxu0 0.0
    %578 = vmatprep.mubr.f32.mxu0 0.0
    %579 = vmatmul.mubr.f32.gmra.mrb[0].mxu0 %v490
    %v580 = vpop.f32.mrb[0].mxu0
    %v581 = vadd.f32 %v512, %v580
    %v582 = vpop.f32.mrb[0].mxu0
    %583 = vdwg.mxu0
    %v584 = vmax.f32 %v581, 0.0
    %s585 = scalar_lea.vmem [#allocation4], 128
    %v586 = vld [vmem:[%s585] sm:$0xff]
    %v587 = vld [vmem:[%s585 + $0x8] sm:$0xff]
    %v588 = vld [vmem:[%s585 + $0x10] sm:$0xff]
    %v589 = vld [vmem:[%s585 + $0x18] sm:$0xff]
    %v590 = vld [vmem:[%s585 + $0x20] sm:$0xff]
    %v591 = vld [vmem:[%s585 + $0x28] sm:$0xff]
    %v592 = vld [vmem:[%s585 + $0x30] sm:$0xff]
    %v593 = vld [vmem:[%s585 + $0x38] sm:$0xff]
    %v594 = vld [vmem:[%s585 + $0x40] sm:$0xff]
    %v595 = vld [vmem:[%s585 + $0x48] sm:$0xff]
    %v596 = vld [vmem:[%s585 + $0x50] sm:$0xff]
    %v597 = vld [vmem:[%s585 + $0x58] sm:$0xff]
    %v598 = vld [vmem:[%s585 + $0x60] sm:$0xff]
    %v599 = vld [vmem:[%s585 + $0x68] sm:$0xff]
    %v600 = vld [vmem:[%s585 + $0x70] sm:$0xff]
    %v601 = vld [vmem:[%s585 + $0x78] sm:$0xff]
    %s602 = scalar_lea.vmem %s4, 1
    %v603 = vld [vmem:[%s602] sm:$0x1]
    %v605 = vlaneseq
    %v606 = vshrl.u32 %v605, 7
    %v607 = vsub.s32 0, %v606
    %v608 = vrot.slane %v603, %v607
    %610 = vmatprep.subr.mxu0 0.0
    %611 = vmatpush1.msra.mxu0 %v586
    %612 = vmatprep.subr.mxu0 0.0
    %613 = vmatpush1.msra.mxu0 %v587
    %614 = vmatprep.subr.mxu0 0.0
    %615 = vmatpush1.msra.mxu0 %v588
    %616 = vmatprep.subr.mxu0 0.0
    %617 = vmatpush1.msra.mxu0 %v589
    %618 = vmatprep.subr.mxu0 0.0
    %619 = vmatpush1.msra.mxu0 %v590
    %620 = vmatprep.subr.mxu0 0.0
    %621 = vmatpush1.msra.mxu0 %v591
    %622 = vmatprep.subr.mxu0 0.0
    %623 = vmatpush1.msra.mxu0 %v592
    %624 = vmatprep.subr.mxu0 0.0
    %625 = vmatpush1.msra.mxu0 %v593
    %626 = vmatprep.subr.mxu0 0.0
    %627 = vmatpush1.msra.mxu0 %v594
    %628 = vmatprep.subr.mxu0 0.0
    %629 = vmatpush1.msra.mxu0 %v595
    %630 = vmatprep.subr.mxu0 0.0
    %631 = vmatpush1.msra.mxu0 %v596
    %632 = vmatprep.subr.mxu0 0.0
    %633 = vmatpush1.msra.mxu0 %v597
    %634 = vmatprep.subr.mxu0 0.0
    %635 = vmatpush1.msra.mxu0 %v598
    %636 = vmatprep.subr.mxu0 0.0
    %637 = vmatpush1.msra.mxu0 %v599
    %638 = vmatprep.subr.mxu0 0.0
    %639 = vmatpush1.msra.mxu0 %v600
    %640 = vmatprep.subr.mxu0 0.0
    %641 = vmatpush1.msra.mxu0 %v601
    %642 = vmatprep.subr.mxu0 0.0
    %643 = vmatpush1.msra.mxu0 0.0
    %644 = vmatprep.subr.mxu0 0.0
    %645 = vmatpush1.msra.mxu0 0.0
    %646 = vmatprep.subr.mxu0 0.0
    %647 = vmatpush1.msra.mxu0 0.0
    %648 = vmatprep.subr.mxu0 0.0
    %649 = vmatpush1.msra.mxu0 0.0
    %650 = vmatprep.subr.mxu0 0.0
    %651 = vmatpush1.msra.mxu0 0.0
    %652 = vmatprep.subr.mxu0 0.0
    %653 = vmatpush1.msra.mxu0 0.0
    %654 = vmatprep.subr.mxu0 0.0
    %655 = vmatpush1.msra.mxu0 0.0
    %656 = vmatprep.subr.mxu0 0.0
    %657 = vmatpush1.msra.mxu0 0.0
    %658 = vmatprep.subr.mxu0 0.0
    %659 = vmatpush1.msra.mxu0 0.0
    %660 = vmatprep.subr.mxu0 0.0
    %661 = vmatpush1.msra.mxu0 0.0
    %662 = vmatprep.subr.mxu0 0.0
    %663 = vmatpush1.msra.mxu0 0.0
    %664 = vmatprep.subr.mxu0 0.0
    %665 = vmatpush1.msra.mxu0 0.0
    %666 = vmatprep.subr.mxu0 0.0
    %667 = vmatpush1.msra.mxu0 0.0
    %668 = vmatprep.subr.mxu0 0.0
    %669 = vmatpush1.msra.mxu0 0.0
    %670 = vmatprep.subr.mxu0 0.0
    %671 = vmatpush1.msra.mxu0 0.0
    %672 = vmatprep.subr.mxu0 0.0
    %673 = vmatpush1.msra.mxu0 0.0
    %674 = vmatprep.mubr.f32.mxu0 0.0
    %675 = vmatmul.mubr.f32.gmra.mrb[0].mxu0 %v584
    %v676 = vpop.f32.mrb[0].mxu0
    %v677 = vadd.f32 %v608, %v676
    %v678 = vpop.f32.mrb[0].mxu0
    %679 = vdwg.mxu0
    %v680 = vmax.f32 %v677, 0.0
    %v681 = vld [vmem:[#allocation6] sm:$0xff]
    %v682 = vld [vmem:[#allocation6 + $0x8] sm:$0xff]
    %v683 = vld [vmem:[#allocation6 + $0x10] sm:$0xff]
    %v684 = vld [vmem:[#allocation6 + $0x18] sm:$0xff]
    %v685 = vld [vmem:[#allocation6 + $0x20] sm:$0xff]
    %v686 = vld [vmem:[#allocation6 + $0x28] sm:$0xff]
    %v687 = vld [vmem:[#allocation6 + $0x30] sm:$0xff]
    %v688 = vld [vmem:[#allocation6 + $0x38] sm:$0xff]
    %v689 = vld [vmem:[#allocation6 + $0x40] sm:$0xff]
    %v690 = vld [vmem:[#allocation6 + $0x48] sm:$0xff]
    %v691 = vld [vmem:[#allocation6 + $0x50] sm:$0xff]
    %v692 = vld [vmem:[#allocation6 + $0x58] sm:$0xff]
    %v693 = vld [vmem:[#allocation6 + $0x60] sm:$0xff]
    %v694 = vld [vmem:[#allocation6 + $0x68] sm:$0xff]
    %v695 = vld [vmem:[#allocation6 + $0x70] sm:$0xff]
    %v696 = vld [vmem:[#allocation6 + $0x78] sm:$0xff]
    %v697 = vld [vmem:[%s6] sm:$0x1]
    %v699 = vlaneseq
    %v700 = vshrl.u32 %v699, 7
    %v701 = vsub.s32 0, %v700
    %v702 = vrot.slane %v697, %v701
    %704 = vmatprep.subr.mxu0 0.0
    %705 = vmatpush1.msra.mxu0 %v681
    %706 = vmatprep.subr.mxu0 0.0
    %707 = vmatpush1.msra.mxu0 %v682
    %708 = vmatprep.subr.mxu0 0.0
    %709 = vmatpush1.msra.mxu0 %v683
    %710 = vmatprep.subr.mxu0 0.0
    %711 = vmatpush1.msra.mxu0 %v684
    %712 = vmatprep.subr.mxu0 0.0
    %713 = vmatpush1.msra.mxu0 %v685
    %714 = vmatprep.subr.mxu0 0.0
    %715 = vmatpush1.msra.mxu0 %v686
    %716 = vmatprep.subr.mxu0 0.0
    %717 = vmatpush1.msra.mxu0 %v687
    %718 = vmatprep.subr.mxu0 0.0
    %719 = vmatpush1.msra.mxu0 %v688
    %720 = vmatprep.subr.mxu0 0.0
    %721 = vmatpush1.msra.mxu0 %v689
    %722 = vmatprep.subr.mxu0 0.0
    %723 = vmatpush1.msra.mxu0 %v690
    %724 = vmatprep.subr.mxu0 0.0
    %725 = vmatpush1.msra.mxu0 %v691
    %726 = vmatprep.subr.mxu0 0.0
    %727 = vmatpush1.msra.mxu0 %v692
    %728 = vmatprep.subr.mxu0 0.0
    %729 = vmatpush1.msra.mxu0 %v693
    %730 = vmatprep.subr.mxu0 0.0
    %731 = vmatpush1.msra.mxu0 %v694
    %732 = vmatprep.subr.mxu0 0.0
    %733 = vmatpush1.msra.mxu0 %v695
    %734 = vmatprep.subr.mxu0 0.0
    %735 = vmatpush1.msra.mxu0 %v696
    %736 = vmatprep.subr.mxu0 0.0
    %737 = vmatpush1.msra.mxu0 0.0
    %738 = vmatprep.subr.mxu0 0.0
    %739 = vmatpush1.msra.mxu0 0.0
    %740 = vmatprep.subr.mxu0 0.0
    %741 = vmatpush1.msra.mxu0 0.0
    %742 = vmatprep.subr.mxu0 0.0
    %743 = vmatpush1.msra.mxu0 0.0
    %744 = vmatprep.subr.mxu0 0.0
    %745 = vmatpush1.msra.mxu0 0.0
    %746 = vmatprep.subr.mxu0 0.0
    %747 = vmatpush1.msra.mxu0 0.0
    %748 = vmatprep.subr.mxu0 0.0
    %749 = vmatpush1.msra.mxu0 0.0
    %750 = vmatprep.subr.mxu0 0.0
    %751 = vmatpush1.msra.mxu0 0.0
    %752 = vmatprep.subr.mxu0 0.0
    %753 = vmatpush1.msra.mxu0 0.0
    %754 = vmatprep.subr.mxu0 0.0
    %755 = vmatpush1.msra.mxu0 0.0
    %756 = vmatprep.subr.mxu0 0.0
    %757 = vmatpush1.msra.mxu0 0.0
    %758 = vmatprep.subr.mxu0 0.0
    %759 = vmatpush1.msra.mxu0 0.0
    %760 = vmatprep.subr.mxu0 0.0
    %761 = vmatpush1.msra.mxu0 0.0
    %762 = vmatprep.subr.mxu0 0.0
    %763 = vmatpush1.msra.mxu0 0.0
    %764 = vmatprep.subr.mxu0 0.0
    %765 = vmatpush1.msra.mxu0 0.0
    %766 = vmatprep.subr.mxu0 0.0
    %767 = vmatpush1.msra.mxu0 0.0
    %768 = vmatprep.mubr.f32.mxu0 0.0
    %769 = vmatmul.mubr.f32.gmra.mrb[0].mxu0 %v680
    %v770 = vpop.f32.mrb[0].mxu0
    %v771 = vadd.f32 %v702, %v770
    %v772 = vpop.f32.mrb[0].mxu0
    %773 = vdwg.mxu0
    %774 = vst [vmem:[%s7] sm:$0xff] %v771
    // Predicated region
    $region42: #{_mlp_forward.1} parent=1 // pred_check
      _
    $region43: #{_mlp_forward.1} parent=1 // pred_check_branch
      %776 = sbr.rel (0) target = $region45
    $region44: #{_mlp_forward.1} parent=1 // pred_region
      _
    $region45: #{_mlp_forward.1} parent=1 // pred_fallthru
      _
    // Predicated region
    $region46: #{_mlp_forward.1} parent=1 // pred_check
      _
    $region47: #{_mlp_forward.1} parent=1 // pred_check_branch
      %778 = sbr.rel (0) target = $region49
    $region48: #{_mlp_forward.1} parent=1 // pred_region
      _
    $region49: #{_mlp_forward.1} parent=1 // pred_fallthru
      _
    %779 = vsyncpa [#allocation3], 1
    %780 = vsyncpa [#allocation5], 1

</llo_original>
